<compile_context>
chip_gen: v7x
topology: tpu7x:2x2x1
jax: 0.10.0
libtpu: 0.0.40
codegen_flags: <defaults>
</compile_context>

<pallas_src>
import jax
import jax.numpy as jnp
from jax.experimental import pallas as pl
from jax.experimental.pallas import tpu as pltpu

LANE = 128
_BN_EPS = 1e-5


# ---------------------------------------------------------------------------
# Fused kernel (built per network topology)
# ---------------------------------------------------------------------------
def _make_fused_kernel(n_hidden, n_rows, hidden_widths_p, out_width_p):
    """Kernel args: x, w_1..w_H, w_out, packed_vecs, o.

    packed_vecs rows: [gamma_1..gamma_H, beta_1..beta_H, b_out], each padded to
    the max lane width.  All statistics / elementwise math stays in f32 (v5e has
    no bf16 VALU/EUP path).
    """
    inv_n = 1.0 / float(n_rows)

    def kernel(*refs):
        x_ref = refs[0]
        w_refs = refs[1:1 + n_hidden]
        w_out_ref = refs[1 + n_hidden]
        vec_ref = refs[2 + n_hidden]
        o_ref = refs[3 + n_hidden]

        vecs = vec_ref[...]                                    # (2H+1, max_w)

        h = x_ref[...].astype(jnp.float32)                     # (N, ninput)
        for i in range(n_hidden):
            d = hidden_widths_p[i]

            # Linear (hidden bias omitted: cancelled exactly by BN mean-sub).
            h = jnp.dot(h, w_refs[i][...], preferred_element_type=jnp.float32)

            # BatchNorm1d, training-mode batch statistics (biased variance),
            # centered form for stability; gamma*rsqrt folded into one scale.
            gamma = vecs[i:i + 1, :d]                          # (1, d)
            beta = vecs[n_hidden + i:n_hidden + i + 1, :d]     # (1, d)
            mean = jnp.sum(h, axis=0, keepdims=True) * inv_n   # (1, d)
            centered = h - mean
            var = jnp.sum(centered * centered, axis=0, keepdims=True) * inv_n
            scale = gamma * jax.lax.rsqrt(var + _BN_EPS)       # (1, d)

            # Folded BN + ReLU: one mul + one add + one max on (N, d).
            h = jnp.maximum(centered * scale + beta, 0.0)

        b_out = vecs[2 * n_hidden:2 * n_hidden + 1, :out_width_p]
        out = jnp.dot(h, w_out_ref[...], preferred_element_type=jnp.float32) + b_out
        o_ref[...] = out.astype(o_ref.dtype)

    return kernel


# ---------------------------------------------------------------------------
# Helpers
# ---------------------------------------------------------------------------
def _full_spec(shape):
    # No grid: one kernel invocation over the full (VMEM-resident) arrays.
    return pl.BlockSpec(shape, lambda: tuple(0 for _ in shape))


def _round_up(n, m):
    return ((n + m - 1) // m) * m


def _pad_axis(a, axis, target):
    pad = target - a.shape[axis]
    if pad == 0:
        return a
    widths = [(0, 0)] * a.ndim
    widths[axis] = (0, pad)
    return jnp.pad(a, widths)


# ---------------------------------------------------------------------------
# One-time parameter preparation: pad lane dims to 128, pack small vectors.
# Call once at init; the per-call forward does no padding / reshaping.
# ---------------------------------------------------------------------------
def prepare_mlp_g_params(params):
    hidden = params["hidden"]
    w_out, b_out = params["out"]
    n_hidden = len(hidden)
    ninput = hidden[0][0].shape[0]

    hidden_widths_p = [_round_up(w.shape[1], LANE) for (w, _b, _g, _be) in hidden]
    out_width = w_out.shape[1]
    out_width_p = _round_up(out_width, LANE)
    max_w_p = max(hidden_widths_p + [out_width_p])

    # Weights: pad ONLY the output (lane) dim to 128.  K dims are never padded
    # to 128; the first layer keeps K = ninput, later layers' K equals the
    # previous layer's padded width (their extra rows are zero and multiply
    # provably-zero activation columns).
    w_padded = []
    prev_p = ninput
    for i, (w, _b, _g, _be) in enumerate(hidden):
        w_p = _pad_axis(_pad_axis(w, 0, prev_p), 1, hidden_widths_p[i])
        w_padded.append(w_p)
        prev_p = hidden_widths_p[i]
    w_out_p = _pad_axis(_pad_axis(w_out, 0, prev_p), 1, out_width_p)

    # Pack gamma_1..H, beta_1..H, b_out into one (2H+1, max_w_p) array -> one DMA.
    rows = [_pad_axis(g, 1, max_w_p) for (_w, _b, g, _be) in hidden]
    rows += [_pad_axis(be, 1, max_w_p) for (_w, _b, _g, be) in hidden]
    rows += [_pad_axis(b_out, 1, max_w_p)]
    vecs = jnp.concatenate(rows, axis=0).astype(jnp.float32)

    return {
        "weights": w_padded,
        "w_out": w_out_p,
        "vecs": vecs,
        "hidden_widths_p": tuple(hidden_widths_p),
        "out_width": out_width,
        "out_width_p": out_width_p,
        "ninput": ninput,
    }


# ---------------------------------------------------------------------------
# Forward: single fused pallas_call, no per-call padding, lane-padded output.
# ---------------------------------------------------------------------------
def mlp_g_forward(x, prep):
    n = x.shape[0]
    n_hidden = len(prep["weights"])
    out_width_p = prep["out_width_p"]

    inputs = [x] + list(prep["weights"]) + [prep["w_out"], prep["vecs"]]
    in_specs = [_full_spec(a.shape) for a in inputs]
    out_shape = (n, out_width_p)

    # Scoped-VMEM limit sized to the actual buffers (with headroom) so larger
    # batches don't hit the 16/32 MiB defaults; clamped to v7x's 64 MiB.
    in_bytes = sum(int(a.size) * a.dtype.itemsize for a in inputs)
    out_bytes = n * out_width_p * 4
    act_bytes = n * max(prep["hidden_widths_p"] + (out_width_p,)) * 4
    vmem_bytes = 2 * (in_bytes + out_bytes) + 6 * act_bytes + (4 << 20)
    vmem_bytes = min(max(int(vmem_bytes), 16 << 20), 64 << 20)

    kernel = _make_fused_kernel(n_hidden, n, prep["hidden_widths_p"], out_width_p)
    out_p = pl.pallas_call(
        kernel,
        out_shape=jax.ShapeDtypeStruct(out_shape, jnp.float32),
        in_specs=in_specs,
        out_specs=_full_spec(out_shape),
        compiler_params=pltpu.CompilerParams(vmem_limit_bytes=vmem_bytes),
    )(*inputs)
    # Lane-padded (n, out_width_p); columns >= prep["out_width"] are exact
    # zeros + b_out padding (i.e. zero).  Consumers slice [:, :out_width] only
    # if they truly need the narrow view.
    return out_p


# ---------------------------------------------------------------------------
# Parameter construction (mirrors MLP_G.__init__ / init_weights)
# ---------------------------------------------------------------------------
def init_mlp_g_params(key, ninput, noutput, layers_str, init_std=0.02):
    layer_sizes = [ninput] + [int(s) for s in layers_str.split('-')]
    params = {"hidden": [], "out": None}
    k = key
    for i in range(len(layer_sizes) - 1):
        din, dout = layer_sizes[i], layer_sizes[i + 1]
        k, kw, kg = jax.random.split(k, 3)
        w = jax.random.normal(kw, (din, dout), jnp.float32) * init_std
        b = jnp.zeros((1, dout), jnp.float32)            # Linear bias (=0)
        # init_weights() applies normal_(0, 0.02) to BatchNorm .weight too.
        gamma = jax.random.normal(kg, (1, dout), jnp.float32) * init_std
        beta = jnp.zeros((1, dout), jnp.float32)
        params["hidden"].append((w, b, gamma, beta))
    k, kw = jax.random.split(k)
    w_out = jax.random.normal(kw, (layer_sizes[-1], noutput), jnp.float32) * init_std
    b_out = jnp.zeros((1, noutput), jnp.float32)
    params["out"] = (w_out, b_out)
    return params


# Pure-JAX reference (no Pallas) for a sanity check — keeps the (cancelled)
# hidden bias and the centered-variance form to mimic PyTorch exactly.
def mlp_g_reference(x, params):
    for (w, b, gamma, beta) in params["hidden"]:
        h = x @ w + b
        mean = jnp.mean(h, axis=0, keepdims=True)
        var = jnp.mean((h - mean) ** 2, axis=0, keepdims=True)
        h = (h - mean) / jnp.sqrt(var + _BN_EPS) * gamma + beta
        x = jnp.maximum(h, 0.0)
    w_out, b_out = params["out"]
    return x @ w_out + b_out


# ---------------------------------------------------------------------------
if __name__ == "__main__":
    # MLP_G(ninput=32, noutput=16, layers="64-32") on a batch of 8 noise rows.
    ninput, noutput, layers_str = 32, 16, "64-32"
    batch = 8

    key = jax.random.PRNGKey(0)
    key_x, key_p = jax.random.split(key)
    x = jax.random.normal(key_x, (batch, ninput), jnp.float32)
    params = init_mlp_g_params(key_p, ninput, noutput, layers_str)

    prep = prepare_mlp_g_params(params)     # one-time pad/pack, cached
    out_p = mlp_g_forward(x, prep)
    out_p = jax.block_until_ready(out_p)

    out = out_p[:, :noutput]                # consumer-side narrow view
    ref = mlp_g_reference(x, params)
    assert out_p.shape == (batch, prep["out_width_p"]), out_p.shape
    assert out.shape == (batch, noutput), out.shape
    assert jnp.allclose(out, ref, atol=1e-4, rtol=1e-4), "mismatch vs reference"
    # Padded output columns must be exactly zero.
    assert jnp.all(out_p[:, noutput:] == 0.0), "padded output columns not zero"

    print("KERNEL_OK")
</pallas_src>

<mosaic_0001>
module attributes {stable_mosaic.version = 11 : i64} {
  func.func @kernel(%arg0: memref<8x32xf32, #tpu.memory_space<vmem>>, %arg1: memref<32x128xf32, #tpu.memory_space<vmem>>, %arg2: memref<128x128xf32, #tpu.memory_space<vmem>>, %arg3: memref<128x128xf32, #tpu.memory_space<vmem>>, %arg4: memref<5x128xf32, #tpu.memory_space<vmem>>, %arg5: memref<8x128xf32, #tpu.memory_space<vmem>>) attributes {dimension_semantics = [], scalar_prefetch = 0 : i64, scratch_operands = 0 : i64, tpu.core_type = #tpu.core_type<tc>} {
    %c0 = arith.constant 0 : index
    %c0_0 = arith.constant 0 : index
    %0 = vector.load %arg4[%c0, %c0_0] : memref<5x128xf32, #tpu.memory_space<vmem>>, vector<5x128xf32>
    %c0_1 = arith.constant 0 : index
    %c0_2 = arith.constant 0 : index
    %1 = vector.load %arg0[%c0_1, %c0_2] : memref<8x32xf32, #tpu.memory_space<vmem>>, vector<8x32xf32>
    %c0_3 = arith.constant 0 : index
    %c0_4 = arith.constant 0 : index
    %2 = vector.load %arg1[%c0_3, %c0_4] : memref<32x128xf32, #tpu.memory_space<vmem>>, vector<32x128xf32>
    %cst = arith.constant dense<0.000000e+00> : vector<8x128xf32>
    %3 = tpu.matmul %1, %2, %cst {dimension_numbers = #tpu.dot_dimension_numbers<[1], [0], [0], [1], [0, 0, 1, 1], [], []>} : vector<8x32xf32>, vector<32x128xf32>, vector<8x128xf32> -> vector<8x128xf32>
    %4 = vector.extract_strided_slice %0 {offsets = [0, 0], sizes = [1, 128], strides = [1, 1]} : vector<5x128xf32> to vector<1x128xf32>
    %5 = vector.extract_strided_slice %0 {offsets = [2, 0], sizes = [1, 128], strides = [1, 1]} : vector<5x128xf32> to vector<1x128xf32>
    %cst_5 = arith.constant dense<0.000000e+00> : vector<128xf32>
    %6 = vector.multi_reduction <add>, %3, %cst_5 [0] : vector<8x128xf32> to vector<128xf32>
    %7 = vector.shape_cast %6 : vector<128xf32> to vector<1x128xf32>
    %cst_6 = arith.constant 1.250000e-01 : f32
    %8 = vector.broadcast %cst_6 : f32 to vector<1x128xf32>
    %9 = arith.mulf %7, %8 : vector<1x128xf32>
    %10 = vector.broadcast %9 : vector<1x128xf32> to vector<8x128xf32>
    %11 = arith.subf %3, %10 : vector<8x128xf32>
    %12 = arith.mulf %11, %11 : vector<8x128xf32>
    %cst_7 = arith.constant dense<0.000000e+00> : vector<128xf32>
    %13 = vector.multi_reduction <add>, %12, %cst_7 [0] : vector<8x128xf32> to vector<128xf32>
    %14 = vector.shape_cast %13 : vector<128xf32> to vector<1x128xf32>
    %cst_8 = arith.constant 1.250000e-01 : f32
    %15 = vector.broadcast %cst_8 : f32 to vector<1x128xf32>
    %16 = arith.mulf %14, %15 : vector<1x128xf32>
    %cst_9 = arith.constant 9.99999974E-6 : f32
    %17 = vector.broadcast %cst_9 : f32 to vector<1x128xf32>
    %18 = arith.addf %16, %17 : vector<1x128xf32>
    %19 = math.rsqrt %18 : vector<1x128xf32>
    %20 = arith.mulf %4, %19 : vector<1x128xf32>
    %21 = vector.broadcast %20 : vector<1x128xf32> to vector<8x128xf32>
    %22 = arith.mulf %11, %21 : vector<8x128xf32>
    %23 = vector.broadcast %5 : vector<1x128xf32> to vector<8x128xf32>
    %24 = arith.addf %22, %23 : vector<8x128xf32>
    %cst_10 = arith.constant 0.000000e+00 : f32
    %25 = vector.broadcast %cst_10 : f32 to vector<8x128xf32>
    %26 = arith.maximumf %24, %25 : vector<8x128xf32>
    %c0_11 = arith.constant 0 : index
    %c0_12 = arith.constant 0 : index
    %27 = vector.load %arg2[%c0_11, %c0_12] : memref<128x128xf32, #tpu.memory_space<vmem>>, vector<128x128xf32>
    %cst_13 = arith.constant dense<0.000000e+00> : vector<8x128xf32>
    %28 = tpu.matmul %26, %27, %cst_13 {dimension_numbers = #tpu.dot_dimension_numbers<[1], [0], [0], [1], [0, 0, 1, 1], [], []>} : vector<8x128xf32>, vector<128x128xf32>, vector<8x128xf32> -> vector<8x128xf32>
    %29 = vector.extract_strided_slice %0 {offsets = [1, 0], sizes = [1, 128], strides = [1, 1]} : vector<5x128xf32> to vector<1x128xf32>
    %30 = vector.extract_strided_slice %0 {offsets = [3, 0], sizes = [1, 128], strides = [1, 1]} : vector<5x128xf32> to vector<1x128xf32>
    %cst_14 = arith.constant dense<0.000000e+00> : vector<128xf32>
    %31 = vector.multi_reduction <add>, %28, %cst_14 [0] : vector<8x128xf32> to vector<128xf32>
    %32 = vector.shape_cast %31 : vector<128xf32> to vector<1x128xf32>
    %cst_15 = arith.constant 1.250000e-01 : f32
    %33 = vector.broadcast %cst_15 : f32 to vector<1x128xf32>
    %34 = arith.mulf %32, %33 : vector<1x128xf32>
    %35 = vector.broadcast %34 : vector<1x128xf32> to vector<8x128xf32>
    %36 = arith.subf %28, %35 : vector<8x128xf32>
    %37 = arith.mulf %36, %36 : vector<8x128xf32>
    %cst_16 = arith.constant dense<0.000000e+00> : vector<128xf32>
    %38 = vector.multi_reduction <add>, %37, %cst_16 [0] : vector<8x128xf32> to vector<128xf32>
    %39 = vector.shape_cast %38 : vector<128xf32> to vector<1x128xf32>
    %cst_17 = arith.constant 1.250000e-01 : f32
    %40 = vector.broadcast %cst_17 : f32 to vector<1x128xf32>
    %41 = arith.mulf %39, %40 : vector<1x128xf32>
    %cst_18 = arith.constant 9.99999974E-6 : f32
    %42 = vector.broadcast %cst_18 : f32 to vector<1x128xf32>
    %43 = arith.addf %41, %42 : vector<1x128xf32>
    %44 = math.rsqrt %43 : vector<1x128xf32>
    %45 = arith.mulf %29, %44 : vector<1x128xf32>
    %46 = vector.broadcast %45 : vector<1x128xf32> to vector<8x128xf32>
    %47 = arith.mulf %36, %46 : vector<8x128xf32>
    %48 = vector.broadcast %30 : vector<1x128xf32> to vector<8x128xf32>
    %49 = arith.addf %47, %48 : vector<8x128xf32>
    %cst_19 = arith.constant 0.000000e+00 : f32
    %50 = vector.broadcast %cst_19 : f32 to vector<8x128xf32>
    %51 = arith.maximumf %49, %50 : vector<8x128xf32>
    %52 = vector.extract_strided_slice %0 {offsets = [4, 0], sizes = [1, 128], strides = [1, 1]} : vector<5x128xf32> to vector<1x128xf32>
    %c0_20 = arith.constant 0 : index
    %c0_21 = arith.constant 0 : index
    %53 = vector.load %arg3[%c0_20, %c0_21] : memref<128x128xf32, #tpu.memory_space<vmem>>, vector<128x128xf32>
    %cst_22 = arith.constant dense<0.000000e+00> : vector<8x128xf32>
    %54 = tpu.matmul %51, %53, %cst_22 {dimension_numbers = #tpu.dot_dimension_numbers<[1], [0], [0], [1], [0, 0, 1, 1], [], []>} : vector<8x128xf32>, vector<128x128xf32>, vector<8x128xf32> -> vector<8x128xf32>
    %55 = vector.broadcast %52 : vector<1x128xf32> to vector<8x128xf32>
    %56 = arith.addf %54, %55 : vector<8x128xf32>
    %c0_23 = arith.constant 0 : index
    %c0_24 = arith.constant 0 : index
    %57 = vector.load %arg5[%c0_23, %c0_24] : memref<8x128xf32, #tpu.memory_space<vmem>>, vector<8x128xf32>
    tpu.vector_store %arg5[%c0_23, %c0_24], %56 {strides = array<i32>} : memref<8x128xf32, #tpu.memory_space<vmem>>, vector<8x128xf32>,
    return
  }
}

</mosaic_0001>

<llo_original>
// kernel: tpu_custom_call.1
$region0: #{tpu_custom_call.1}
  #allocation0 [shape = 'u32[]', space=smem, size = 0x4, offset = 0x4, fixed_abs, tag = 'smem constant byte address 0x4 - core index']
  #allocation1 [shape = 'u32[144,128]{1,0:T(1,128)}', space=vmem, size = 0x12000, scoped, tag = 'internal scratch']
  %s0 = inlined_call_operand.hbm [shape: f32[8,32], index: 0, kind: input, shape index: {}]
  %s1 = inlined_call_operand.hbm [shape: f32[32,128], index: 1, kind: input, shape index: {}]
  %s2 = inlined_call_operand.hbm [shape: f32[128,128], index: 2, kind: input, shape index: {}]
  %s3 = inlined_call_operand.hbm [shape: f32[128,128], index: 3, kind: input, shape index: {}]
  %s4 = inlined_call_operand.vmem [shape: f32[5,128], index: 4, kind: input, shape index: {}]
  %s5 = inlined_call_operand.hbm [shape: f32[8,128], index: 5, kind: output, shape index: {}]
  %s6 = sld [smem:[#allocation0]]
  $region46: #{tpu_custom_call.1} parent=0
    _
  %s8 = ssub.s32 1, %s6
  %s9 = scalar_select 0, %s8, %s6
  $region1: #{tpu_custom_call.1} parent=0
    #allocation2 [shape = 'u8[4096]{0}', space=vmem, size = 0x1000, scoped, tag = 'input window, operand 0, single buffered']
    #allocation3 [shape = 's32[1]{0}', space=sflag, size = 0x4, scoped, tag = 'scoped memory for tpu_custom_call.1']
    #allocation4 [shape = 's32[1]{0}', space=sflag, size = 0x4, scoped, tag = 'scoped memory for tpu_custom_call.1']
    #allocation5 [shape = 'u8[16384]{0}', space=vmem, size = 0x4000, scoped, tag = 'input window, operand 1, single buffered']
    #allocation6 [shape = 's32[1]{0}', space=sflag, size = 0x4, scoped, tag = 'scoped memory for tpu_custom_call.1']
    #allocation7 [shape = 'u8[65536]{0}', space=vmem, size = 0x10000, scoped, tag = 'input window, operand 2, single buffered']
    #allocation8 [shape = 'u8[65536]{0}', space=vmem, size = 0x10000, scoped, tag = 'input window, operand 3, single buffered']
    #allocation9 [shape = 's32[1]{0}', space=sflag, size = 0x4, scoped, tag = 'scoped memory for tpu_custom_call.1']
    #allocation10 [shape = 'u8[4096]{0}', space=vmem, size = 0x1000, scoped, tag = 'output window, operand 0, single buffered']
    %10 = vsyncpa [#allocation3], 0
    %11 = vsyncpa [#allocation6], 0
    %12 = vsyncpa [#allocation9], 0
    %13 = vsyncpa [#allocation4], 0
    // Predicated region
    $region2: #{tpu_custom_call.1} parent=1 // pred_check
      _
    $region3: #{tpu_custom_call.1} parent=1 // pred_check_branch
      %15 = sbr.rel (0) target = $region5
    $region4: #{tpu_custom_call.1} parent=1 // pred_region
      %s17 = ssub.s32 128, 128
      %18 = vsyncadd [#allocation3], %s17
      %s20 = sshll.u32 [#allocation2], 4
      %s21 = int_to_ptr.vmem [resolvable:$true] %s20
      %23 = dma.hbm_to_vmem [thread:$0]  %s0, 128, %s21, [#allocation3]
    $region5: #{tpu_custom_call.1} parent=1 // pred_fallthru
      _
    // Predicated region
    $region6: #{tpu_custom_call.1} parent=1 // pred_check
      _
    $region7: #{tpu_custom_call.1} parent=1 // pred_check_branch
      %25 = sbr.rel (0) target = $region9
    $region8: #{tpu_custom_call.1} parent=1 // pred_region
      %s27 = ssub.s32 512, 512
      %28 = vsyncadd [#allocation6], %s27
      %s29 = sshll.u32 [#allocation5], 4
      %s30 = int_to_ptr.vmem [resolvable:$true] %s29
      %35 = dma.hbm_to_vmem [thread:$0]  %s1, 512, %s30, [#allocation6], 128, 128, 8
    $region9: #{tpu_custom_call.1} parent=1 // pred_fallthru
      _
    // Predicated region
    $region10: #{tpu_custom_call.1} parent=1 // pred_check
      _
    $region11: #{tpu_custom_call.1} parent=1 // pred_check_branch
      %37 = sbr.rel (0) target = $region13
    $region12: #{tpu_custom_call.1} parent=1 // pred_region
      %s39 = ssub.s32 2048, 2048
      %40 = vsyncadd [#allocation6], %s39
      %s41 = sshll.u32 [#allocation7], 4
      %s42 = int_to_ptr.vmem [resolvable:$true] %s41
      %47 = dma.hbm_to_vmem [thread:$0]  %s2, 2048, %s42, [#allocation6], 128, 128, 8
    $region13: #{tpu_custom_call.1} parent=1 // pred_fallthru
      _
    // Predicated region
    $region14: #{tpu_custom_call.1} parent=1 // pred_check
      _
    $region15: #{tpu_custom_call.1} parent=1 // pred_check_branch
      %49 = sbr.rel (0) target = $region17
    $region16: #{tpu_custom_call.1} parent=1 // pred_region
      %s51 = ssub.s32 2048, 2048
      %52 = vsyncadd [#allocation9], %s51
      %s53 = sshll.u32 [#allocation8], 4
      %s54 = int_to_ptr.vmem [resolvable:$true] %s53
      %59 = dma.hbm_to_vmem [thread:$0]  %s3, 2048, %s54, [#allocation9], 128, 128, 8
    $region17: #{tpu_custom_call.1} parent=1 // pred_fallthru
      _
    // Predicated region
    $region18: #{tpu_custom_call.1} parent=1 // pred_check
      _
    $region19: #{tpu_custom_call.1} parent=1 // pred_check_branch
      %61 = sbr.rel (0) target = $region21
    $region20: #{tpu_custom_call.1} parent=1 // pred_region
      _
    $region21: #{tpu_custom_call.1} parent=1 // pred_fallthru
      _
    // Predicated region
    $region22: #{tpu_custom_call.1} parent=1 // pred_check
      _
    $region23: #{tpu_custom_call.1} parent=1 // pred_check_branch
      %63 = sbr.rel (0) target = $region25
    $region24: #{tpu_custom_call.1} parent=1 // pred_region
      %64 = dma.done [#allocation3], 128
    $region25: #{tpu_custom_call.1} parent=1 // pred_fallthru
      _
    // Predicated region
    $region26: #{tpu_custom_call.1} parent=1 // pred_check
      _
    $region27: #{tpu_custom_call.1} parent=1 // pred_check_branch
      %66 = sbr.rel (0) target = $region29
    $region28: #{tpu_custom_call.1} parent=1 // pred_region
      %67 = dma.done [#allocation6], 512
    $region29: #{tpu_custom_call.1} parent=1 // pred_fallthru
      _
    // Predicated region
    $region30: #{tpu_custom_call.1} parent=1 // pred_check
      _
    $region31: #{tpu_custom_call.1} parent=1 // pred_check_branch
      %69 = sbr.rel (0) target = $region33
    $region32: #{tpu_custom_call.1} parent=1 // pred_region
      %70 = dma.done [#allocation6], 2048
    $region33: #{tpu_custom_call.1} parent=1 // pred_fallthru
      _
    // Predicated region
    $region34: #{tpu_custom_call.1} parent=1 // pred_check
      _
    $region35: #{tpu_custom_call.1} parent=1 // pred_check_branch
      %72 = sbr.rel (0) target = $region37
    $region36: #{tpu_custom_call.1} parent=1 // pred_region
      %73 = dma.done [#allocation9], 2048
    $region37: #{tpu_custom_call.1} parent=1 // pred_fallthru
      _
    %v74 = vld [vmem:[%s4] sm:$0x1f]
    %v75 = vld [vmem:[#allocation2] sm:$0xff]
    %v76 = vld [vmem:[#allocation5] sm:$0xff]
    %v77 = vld [vmem:[#allocation5 + $0x8] sm:$0xff]
    %v78 = vld [vmem:[#allocation5 + $0x10] sm:$0xff]
    %v79 = vld [vmem:[#allocation5 + $0x18] sm:$0xff]
    %vm80 = vcmask 261120
    %v82 = vsel %vm80, %v75, 0
    %84 = vmatprep.subr.mxu0 0.0
    %85 = vmatpush1.msra.mxu0 %v76
    %86 = vmatprep.subr.mxu0 0.0
    %87 = vmatpush1.msra.mxu0 %v77
    %88 = vmatprep.subr.mxu0 0.0
    %89 = vmatpush1.msra.mxu0 %v78
    %90 = vmatprep.subr.mxu0 0.0
    %91 = vmatpush1.msra.mxu0 %v79
    %92 = vmatprep.subr.mxu0 0.0
    %93 = vmatpush1.msra.mxu0 0.0
    %94 = vmatprep.subr.mxu0 0.0
    %95 = vmatpush1.msra.mxu0 0.0
    %96 = vmatprep.subr.mxu0 0.0
    %97 = vmatpush1.msra.mxu0 0.0
    %98 = vmatprep.subr.mxu0 0.0
    %99 = vmatpush1.msra.mxu0 0.0
    %100 = vmatprep.subr.mxu0 0.0
    %101 = vmatpush1.msra.mxu0 0.0
    %102 = vmatprep.subr.mxu0 0.0
    %103 = vmatpush1.msra.mxu0 0.0
    %104 = vmatprep.subr.mxu0 0.0
    %105 = vmatpush1.msra.mxu0 0.0
    %106 = vmatprep.subr.mxu0 0.0
    %107 = vmatpush1.msra.mxu0 0.0
    %108 = vmatprep.subr.mxu0 0.0
    %109 = vmatpush1.msra.mxu0 0.0
    %110 = vmatprep.subr.mxu0 0.0
    %111 = vmatpush1.msra.mxu0 0.0
    %112 = vmatprep.subr.mxu0 0.0
    %113 = vmatpush1.msra.mxu0 0.0
    %114 = vmatprep.subr.mxu0 0.0
    %115 = vmatpush1.msra.mxu0 0.0
    %116 = vmatprep.subr.mxu0 0.0
    %117 = vmatpush1.msra.mxu0 0.0
    %118 = vmatprep.subr.mxu0 0.0
    %119 = vmatpush1.msra.mxu0 0.0
    %120 = vmatprep.subr.mxu0 0.0
    %121 = vmatpush1.msra.mxu0 0.0
    %122 = vmatprep.subr.mxu0 0.0
    %123 = vmatpush1.msra.mxu0 0.0
    %124 = vmatprep.subr.mxu0 0.0
    %125 = vmatpush1.msra.mxu0 0.0
    %126 = vmatprep.subr.mxu0 0.0
    %127 = vmatpush1.msra.mxu0 0.0
    %128 = vmatprep.subr.mxu0 0.0
    %129 = vmatpush1.msra.mxu0 0.0
    %130 = vmatprep.subr.mxu0 0.0
    %131 = vmatpush1.msra.mxu0 0.0
    %132 = vmatprep.subr.mxu0 0.0
    %133 = vmatpush1.msra.mxu0 0.0
    %134 = vmatprep.subr.mxu0 0.0
    %135 = vmatpush1.msra.mxu0 0.0
    %136 = vmatprep.subr.mxu0 0.0
    %137 = vmatpush1.msra.mxu0 0.0
    %138 = vmatprep.subr.mxu0 0.0
    %139 = vmatpush1.msra.mxu0 0.0
    %140 = vmatprep.subr.mxu0 0.0
    %141 = vmatpush1.msra.mxu0 0.0
    %142 = vmatprep.subr.mxu0 0.0
    %143 = vmatpush1.msra.mxu0 0.0
    %144 = vmatprep.subr.mxu0 0.0
    %145 = vmatpush1.msra.mxu0 0.0
    %146 = vmatprep.subr.mxu0 0.0
    %147 = vmatpush1.msra.mxu0 0.0
    %148 = vmatprep.mubr.f32.mxu0 0.0
    %149 = vmatmul.mubr.f32.gmra.mrb[0].mxu0 %v82
    %v150 = vpop.f32.mrb[0].mxu0
    %v151 = vadd.f32 0.0, %v150
    %v152 = vpop.f32.mrb[0].mxu0
    %153 = vdwg.mxu0
    %v154 = vrot.slane %v151, 4
    %v155 = vadd.f32 %v151, %v154
    %v156 = vrot.slane %v155, 2
    %v157 = vadd.f32 %v155, %v156
    %v158 = vrot.slane %v157, 1
    %v159 = vadd.f32 %v157, %v158
    %v160 = vmul.f32 %v159, 0.125
    %v161 = vsub.f32 %v151, %v160
    %v162 = vmul.f32 %v161, %v161
    %v163 = vrot.slane %v162, 4
    %v164 = vadd.f32 %v162, %v163
    %v165 = vrot.slane %v164, 2
    %v166 = vadd.f32 %v164, %v165
    %v167 = vrot.slane %v166, 1
    %v168 = vadd.f32 %v166, %v167
    %v169 = vmul.f32 %v168, 0.125
    %v170 = vadd.f32 %v169, 1e-05
    %v171 = vrsqrt.pop %v170
    %v172 = vmul.f32 %v74, %v171
    %v173 = vlaneseq
    %v174 = vshrl.u32 %v173, 7
    %v175 = vsub.s32 0, %v174
    %v176 = vrot.slane %v172, %v175
    %v177 = vmul.f32 %v161, %v176
    %v178 = vlaneseq
    %v179 = vshrl.u32 %v178, 7
    %v180 = vsub.s32 2, %v179
    %v181 = vrot.slane %v74, %v180
    %v182 = vadd.f32 %v177, %v181
    %v183 = vmax.f32 %v182, 0.0
    %v184 = vld [vmem:[#allocation7] sm:$0xff]
    %v185 = vld [vmem:[#allocation7 + $0x8] sm:$0xff]
    %v186 = vld [vmem:[#allocation7 + $0x10] sm:$0xff]
    %v187 = vld [vmem:[#allocation7 + $0x18] sm:$0xff]
    %v188 = vld [vmem:[#allocation7 + $0x20] sm:$0xff]
    %v189 = vld [vmem:[#allocation7 + $0x28] sm:$0xff]
    %v190 = vld [vmem:[#allocation7 + $0x30] sm:$0xff]
    %v191 = vld [vmem:[#allocation7 + $0x38] sm:$0xff]
    %v192 = vld [vmem:[#allocation7 + $0x40] sm:$0xff]
    %v193 = vld [vmem:[#allocation7 + $0x48] sm:$0xff]
    %v194 = vld [vmem:[#allocation7 + $0x50] sm:$0xff]
    %v195 = vld [vmem:[#allocation7 + $0x58] sm:$0xff]
    %v196 = vld [vmem:[#allocation7 + $0x60] sm:$0xff]
    %v197 = vld [vmem:[#allocation7 + $0x68] sm:$0xff]
    %v198 = vld [vmem:[#allocation7 + $0x70] sm:$0xff]
    %v199 = vld [vmem:[#allocation7 + $0x78] sm:$0xff]
    %200 = vmatprep.subr.mxu0 0.0
    %201 = vmatpush1.msra.mxu0 %v184
    %202 = vmatprep.subr.mxu0 0.0
    %203 = vmatpush1.msra.mxu0 %v185
    %204 = vmatprep.subr.mxu0 0.0
    %205 = vmatpush1.msra.mxu0 %v186
    %206 = vmatprep.subr.mxu0 0.0
    %207 = vmatpush1.msra.mxu0 %v187
    %208 = vmatprep.subr.mxu0 0.0
    %209 = vmatpush1.msra.mxu0 %v188
    %210 = vmatprep.subr.mxu0 0.0
    %211 = vmatpush1.msra.mxu0 %v189
    %212 = vmatprep.subr.mxu0 0.0
    %213 = vmatpush1.msra.mxu0 %v190
    %214 = vmatprep.subr.mxu0 0.0
    %215 = vmatpush1.msra.mxu0 %v191
    %216 = vmatprep.subr.mxu0 0.0
    %217 = vmatpush1.msra.mxu0 %v192
    %218 = vmatprep.subr.mxu0 0.0
    %219 = vmatpush1.msra.mxu0 %v193
    %220 = vmatprep.subr.mxu0 0.0
    %221 = vmatpush1.msra.mxu0 %v194
    %222 = vmatprep.subr.mxu0 0.0
    %223 = vmatpush1.msra.mxu0 %v195
    %224 = vmatprep.subr.mxu0 0.0
    %225 = vmatpush1.msra.mxu0 %v196
    %226 = vmatprep.subr.mxu0 0.0
    %227 = vmatpush1.msra.mxu0 %v197
    %228 = vmatprep.subr.mxu0 0.0
    %229 = vmatpush1.msra.mxu0 %v198
    %230 = vmatprep.subr.mxu0 0.0
    %231 = vmatpush1.msra.mxu0 %v199
    %232 = vmatprep.subr.mxu0 0.0
    %233 = vmatpush1.msra.mxu0 0.0
    %234 = vmatprep.subr.mxu0 0.0
    %235 = vmatpush1.msra.mxu0 0.0
    %236 = vmatprep.subr.mxu0 0.0
    %237 = vmatpush1.msra.mxu0 0.0
    %238 = vmatprep.subr.mxu0 0.0
    %239 = vmatpush1.msra.mxu0 0.0
    %240 = vmatprep.subr.mxu0 0.0
    %241 = vmatpush1.msra.mxu0 0.0
    %242 = vmatprep.subr.mxu0 0.0
    %243 = vmatpush1.msra.mxu0 0.0
    %244 = vmatprep.subr.mxu0 0.0
    %245 = vmatpush1.msra.mxu0 0.0
    %246 = vmatprep.subr.mxu0 0.0
    %247 = vmatpush1.msra.mxu0 0.0
    %248 = vmatprep.subr.mxu0 0.0
    %249 = vmatpush1.msra.mxu0 0.0
    %250 = vmatprep.subr.mxu0 0.0
    %251 = vmatpush1.msra.mxu0 0.0
    %252 = vmatprep.subr.mxu0 0.0
    %253 = vmatpush1.msra.mxu0 0.0
    %254 = vmatprep.subr.mxu0 0.0
    %255 = vmatpush1.msra.mxu0 0.0
    %256 = vmatprep.subr.mxu0 0.0
    %257 = vmatpush1.msra.mxu0 0.0
    %258 = vmatprep.subr.mxu0 0.0
    %259 = vmatpush1.msra.mxu0 0.0
    %260 = vmatprep.subr.mxu0 0.0
    %261 = vmatpush1.msra.mxu0 0.0
    %262 = vmatprep.subr.mxu0 0.0
    %263 = vmatpush1.msra.mxu0 0.0
    %264 = vmatprep.mubr.f32.mxu0 0.0
    %265 = vmatmul.mubr.f32.gmra.mrb[0].mxu0 %v183
    %v266 = vpop.f32.mrb[0].mxu0
    %v267 = vadd.f32 0.0, %v266
    %v268 = vpop.f32.mrb[0].mxu0
    %269 = vdwg.mxu0
    %v270 = vrot.slane %v267, 4
    %v271 = vadd.f32 %v267, %v270
    %v272 = vrot.slane %v271, 2
    %v273 = vadd.f32 %v271, %v272
    %v274 = vrot.slane %v273, 1
    %v275 = vadd.f32 %v273, %v274
    %v276 = vmul.f32 %v275, 0.125
    %v277 = vsub.f32 %v267, %v276
    %v278 = vmul.f32 %v277, %v277
    %v279 = vrot.slane %v278, 4
    %v280 = vadd.f32 %v278, %v279
    %v281 = vrot.slane %v280, 2
    %v282 = vadd.f32 %v280, %v281
    %v283 = vrot.slane %v282, 1
    %v284 = vadd.f32 %v282, %v283
    %v285 = vmul.f32 %v284, 0.125
    %v286 = vadd.f32 %v285, 1e-05
    %v287 = vrsqrt.pop %v286
    %v288 = vmul.f32 %v74, %v287
    %v289 = vlaneseq
    %v290 = vshrl.u32 %v289, 7
    %v291 = vsub.s32 1, %v290
    %v292 = vrot.slane %v288, %v291
    %v293 = vmul.f32 %v277, %v292
    %v294 = vlaneseq
    %v295 = vshrl.u32 %v294, 7
    %v296 = vsub.s32 3, %v295
    %v297 = vrot.slane %v74, %v296
    %v298 = vadd.f32 %v293, %v297
    %v299 = vmax.f32 %v298, 0.0
    %v300 = vld [vmem:[#allocation8] sm:$0xff]
    %v301 = vld [vmem:[#allocation8 + $0x8] sm:$0xff]
    %v302 = vld [vmem:[#allocation8 + $0x10] sm:$0xff]
    %v303 = vld [vmem:[#allocation8 + $0x18] sm:$0xff]
    %v304 = vld [vmem:[#allocation8 + $0x20] sm:$0xff]
    %v305 = vld [vmem:[#allocation8 + $0x28] sm:$0xff]
    %v306 = vld [vmem:[#allocation8 + $0x30] sm:$0xff]
    %v307 = vld [vmem:[#allocation8 + $0x38] sm:$0xff]
    %v308 = vld [vmem:[#allocation8 + $0x40] sm:$0xff]
    %v309 = vld [vmem:[#allocation8 + $0x48] sm:$0xff]
    %v310 = vld [vmem:[#allocation8 + $0x50] sm:$0xff]
    %v311 = vld [vmem:[#allocation8 + $0x58] sm:$0xff]
    %v312 = vld [vmem:[#allocation8 + $0x60] sm:$0xff]
    %v313 = vld [vmem:[#allocation8 + $0x68] sm:$0xff]
    %v314 = vld [vmem:[#allocation8 + $0x70] sm:$0xff]
    %v315 = vld [vmem:[#allocation8 + $0x78] sm:$0xff]
    %v316 = vlaneseq
    %v317 = vshrl.u32 %v316, 7
    %v318 = vsub.s32 4, %v317
    %v319 = vrot.slane %v74, %v318
    %320 = vmatprep.subr.mxu0 0.0
    %321 = vmatpush1.msra.mxu0 %v300
    %322 = vmatprep.subr.mxu0 0.0
    %323 = vmatpush1.msra.mxu0 %v301
    %324 = vmatprep.subr.mxu0 0.0
    %325 = vmatpush1.msra.mxu0 %v302
    %326 = vmatprep.subr.mxu0 0.0
    %327 = vmatpush1.msra.mxu0 %v303
    %328 = vmatprep.subr.mxu0 0.0
    %329 = vmatpush1.msra.mxu0 %v304
    %330 = vmatprep.subr.mxu0 0.0
    %331 = vmatpush1.msra.mxu0 %v305
    %332 = vmatprep.subr.mxu0 0.0
    %333 = vmatpush1.msra.mxu0 %v306
    %334 = vmatprep.subr.mxu0 0.0
    %335 = vmatpush1.msra.mxu0 %v307
    %336 = vmatprep.subr.mxu0 0.0
    %337 = vmatpush1.msra.mxu0 %v308
    %338 = vmatprep.subr.mxu0 0.0
    %339 = vmatpush1.msra.mxu0 %v309
    %340 = vmatprep.subr.mxu0 0.0
    %341 = vmatpush1.msra.mxu0 %v310
    %342 = vmatprep.subr.mxu0 0.0
    %343 = vmatpush1.msra.mxu0 %v311
    %344 = vmatprep.subr.mxu0 0.0
    %345 = vmatpush1.msra.mxu0 %v312
    %346 = vmatprep.subr.mxu0 0.0
    %347 = vmatpush1.msra.mxu0 %v313
    %348 = vmatprep.subr.mxu0 0.0
    %349 = vmatpush1.msra.mxu0 %v314
    %350 = vmatprep.subr.mxu0 0.0
    %351 = vmatpush1.msra.mxu0 %v315
    %352 = vmatprep.subr.mxu0 0.0
    %353 = vmatpush1.msra.mxu0 0.0
    %354 = vmatprep.subr.mxu0 0.0
    %355 = vmatpush1.msra.mxu0 0.0
    %356 = vmatprep.subr.mxu0 0.0
    %357 = vmatpush1.msra.mxu0 0.0
    %358 = vmatprep.subr.mxu0 0.0
    %359 = vmatpush1.msra.mxu0 0.0
    %360 = vmatprep.subr.mxu0 0.0
    %361 = vmatpush1.msra.mxu0 0.0
    %362 = vmatprep.subr.mxu0 0.0
    %363 = vmatpush1.msra.mxu0 0.0
    %364 = vmatprep.subr.mxu0 0.0
    %365 = vmatpush1.msra.mxu0 0.0
    %366 = vmatprep.subr.mxu0 0.0
    %367 = vmatpush1.msra.mxu0 0.0
    %368 = vmatprep.subr.mxu0 0.0
    %369 = vmatpush1.msra.mxu0 0.0
    %370 = vmatprep.subr.mxu0 0.0
    %371 = vmatpush1.msra.mxu0 0.0
    %372 = vmatprep.subr.mxu0 0.0
    %373 = vmatpush1.msra.mxu0 0.0
    %374 = vmatprep.subr.mxu0 0.0
    %375 = vmatpush1.msra.mxu0 0.0
    %376 = vmatprep.subr.mxu0 0.0
    %377 = vmatpush1.msra.mxu0 0.0
    %378 = vmatprep.subr.mxu0 0.0
    %379 = vmatpush1.msra.mxu0 0.0
    %380 = vmatprep.subr.mxu0 0.0
    %381 = vmatpush1.msra.mxu0 0.0
    %382 = vmatprep.subr.mxu0 0.0
    %383 = vmatpush1.msra.mxu0 0.0
    %384 = vmatprep.mubr.f32.mxu0 0.0
    %385 = vmatmul.mubr.f32.gmra.mrb[0].mxu0 %v299
    %v386 = vpop.f32.mrb[0].mxu0
    %v387 = vadd.f32 %v319, %v386
    %v388 = vpop.f32.mrb[0].mxu0
    %389 = vdwg.mxu0
    %390 = vst [vmem:[#allocation10] sm:$0xff] %v387
    // Predicated region
    $region38: #{tpu_custom_call.1} parent=1 // pred_check
      _
    $region39: #{tpu_custom_call.1} parent=1 // pred_check_branch
      %392 = sbr.rel (0) target = $region41
    $region40: #{tpu_custom_call.1} parent=1 // pred_region
      %s394 = ssub.s32 128, 128
      %395 = vsyncadd [#allocation4], %s394
      %s397 = sshll.u32 [#allocation10], 4
      %s398 = int_to_ptr.vmem [resolvable:$true] %s397
      %400 = dma.vmem_to_hbm [thread:$0]  %s398, 128, %s5, [#allocation4]
    $region41: #{tpu_custom_call.1} parent=1 // pred_fallthru
      _
    // Predicated region
    $region42: #{tpu_custom_call.1} parent=1 // pred_check
      _
    $region43: #{tpu_custom_call.1} parent=1 // pred_check_branch
      %402 = sbr.rel (0) target = $region45
    $region44: #{tpu_custom_call.1} parent=1 // pred_region
      %403 = dma.done [#allocation4], 128
    $region45: #{tpu_custom_call.1} parent=1 // pred_fallthru
      _
    %404 = vsyncpa [#allocation3], 1
    %405 = vsyncpa [#allocation6], 1
    %406 = vsyncpa [#allocation9], 1
    %407 = vsyncpa [#allocation4], 1

</llo_original>
